<compile_context>
chip_gen: v7x
topology: tpu7x:2x2x1
jax: 0.10.0
libtpu: 0.0.40
codegen_flags: <defaults>
</compile_context>

<pallas_src>
import jax
import jax.numpy as jnp
from jax.experimental import pallas as pl
from jax.experimental.pallas import tpu as pltpu

TAU = 0.5  # strictly positive, monotone scaling -> cancels out of the hard argmax


def _sample_selector_kernel(x_ref, wd_ref, thr_ref, out_ref):
    x = x_ref[...].astype(jnp.float32)                    # [tm, D]
    wd = wd_ref[...].astype(jnp.float32)                  # [1, D]  (w1 - w0)
    thr = thr_ref[...].astype(jnp.float32)                # [tm, 1] (b1-b0 + g1-g0)

    # Per-row logit difference: VPU broadcast-multiply + XLU lane reduce (no MXU).
    diff = jnp.sum(x * wd, axis=-1, keepdims=True) + thr  # [tm, 1]

    # argmax == class 1  <=>  perturbed-logit diff > 0 (ties -> class 0, like torch.argmax).
    mask = (diff > 0.0).astype(jnp.float32)               # hard 0/1 row mask
    out_ref[...] = (x * mask).astype(out_ref.dtype)       # [tm, D]


def sample_selector_forward(x, w, b, u0, u1, *, block_rows=8192):
    """x: [N, D], w: [2, D] (as nn.Linear stores it), b: [2],
    u0/u1: [N, 1] uniform(0,1) noise columns (class 0 / class 1)."""
    n, d = x.shape
    f32 = jnp.float32

    # ---- wrapper-side hoists (cheap: ~12 B/row vs the kernel's ~768 B/row) ----
    wd = (w[1:2, :] - w[0:1, :]).astype(f32)               # [1, D]
    g0 = -jnp.log(-jnp.log(u0.astype(f32) + 1e-10) + 1e-10)
    g1 = -jnp.log(-jnp.log(u1.astype(f32) + 1e-10) + 1e-10)
    thr = (b[1] - b[0]).astype(f32) + (g1 - g0)            # [N, 1]

    # ---- row tiling: cdiv grid + zero row padding (padded rows give zero output) ----
    if n >= block_rows:
        tm = block_rows
    else:
        tm = max(8, ((n + 7) // 8) * 8)                    # single small block, sublane-aligned
    n_pad = pl.cdiv(n, tm) * tm
    if n_pad != n:
        x_in = jnp.pad(x, ((0, n_pad - n), (0, 0)))
        thr = jnp.pad(thr, ((0, n_pad - n), (0, 0)))
    else:
        x_in = x
    grid = (n_pad // tm,)

    row_spec = pl.BlockSpec((tm, d), lambda i: (i, 0))
    thr_spec = pl.BlockSpec((tm, 1), lambda i: (i, 0))
    wd_spec = pl.BlockSpec((1, d), lambda i: (0, 0))

    out = pl.pallas_call(
        _sample_selector_kernel,
        out_shape=jax.ShapeDtypeStruct((n_pad, d), x.dtype),
        grid=grid,
        in_specs=[row_spec, wd_spec, thr_spec],
        out_specs=row_spec,
        compiler_params=pltpu.CompilerParams(
            dimension_semantics=("parallel",),
            vmem_limit_bytes=48 << 20,      # <= physical VMEM on v5e/v6e/v7x, > default scoped
        ),
        cost_estimate=pl.CostEstimate(
            flops=3 * n_pad * d,            # mul + reduce-add + mask-mul
            transcendentals=0,              # all log() hoisted to the wrapper
            bytes_accessed=2 * n_pad * d * x.dtype.itemsize + n_pad * 4,
        ),
    )(x_in, wd, thr)

    return out[:n] if n_pad != n else out


if __name__ == "__main__":
    key = jax.random.PRNGKey(0)
    k_x, k_w, k_b, k_u0, k_u1 = jax.random.split(key, 5)

    N, D = 16, 96  # matches SampleSelector(input_dim=96); x is [N, D]

    x = jax.random.normal(k_x, (N, D), dtype=jnp.float32)
    # Deterministic Linear(96 -> 2) params (PyTorch default uniform init range).
    bound = 1.0 / (D ** 0.5)
    w = jax.random.uniform(k_w, (2, D), minval=-bound, maxval=bound, dtype=jnp.float32)
    b = jax.random.uniform(k_b, (2,), minval=-bound, maxval=bound, dtype=jnp.float32)
    # Uniform noise standing in for torch.rand_like(logits), one column per class.
    u0 = jax.random.uniform(k_u0, (N, 1), dtype=jnp.float32)
    u1 = jax.random.uniform(k_u1, (N, 1), dtype=jnp.float32)

    out = sample_selector_forward(x, w, b, u0, u1)
    jax.block_until_ready(out)

    # Pure-JAX reference of the ORIGINAL forward (full softmax + straight-through).
    u = jnp.concatenate([u0, u1], axis=-1)                      # [N, 2]
    logits_ref = x @ w.T + b
    g_ref = -jnp.log(-jnp.log(u + 1e-10) + 1e-10)
    y_ref = jax.nn.softmax((logits_ref + g_ref) / TAU, axis=-1)
    hard1_ref = (y_ref[:, 1:2] > y_ref[:, 0:1]).astype(jnp.float32)
    mask_ref = (hard1_ref - y_ref[:, 1:2]) + y_ref[:, 1:2]      # straight-through fwd value
    ref = x * mask_ref
    # Hard 0/1 mask vs straight-through value differs by <= ~1 ulp of the mask.
    assert jnp.allclose(out, ref, atol=1e-5, rtol=1e-5), float(jnp.max(jnp.abs(out - ref)))

    print("KERNEL_OK")
</pallas_src>

<mosaic_0001>
module attributes {stable_mosaic.version = 11 : i64} {
  func.func @_sample_selector_kernel(%arg0: i32, %arg1: memref<16x96xf32, #tpu.memory_space<vmem>>, %arg2: memref<1x96xf32, #tpu.memory_space<vmem>>, %arg3: memref<16x1xf32, #tpu.memory_space<vmem>>, %arg4: memref<16x96xf32, #tpu.memory_space<vmem>>) attributes {dimension_semantics = [#tpu.dimension_semantics<parallel>], iteration_bounds = array<i64: 1>, scalar_prefetch = 0 : i64, scratch_operands = 0 : i64, tpu.core_type = #tpu.core_type<tc>, window_params = [{transform_indices = @transform_0, window_bounds = array<i64: 16, 96>}, {pipeline_mode = #tpu.pipeline_mode<synchronous>, transform_indices = @transform_1, window_bounds = array<i64: 1, 96>}, {transform_indices = @transform_2, window_bounds = array<i64: 16, 1>}, {transform_indices = @transform_3, window_bounds = array<i64: 16, 96>}]} {
    %c0 = arith.constant 0 : index
    %c0_0 = arith.constant 0 : index
    %0 = vector.load %arg1[%c0, %c0_0] : memref<16x96xf32, #tpu.memory_space<vmem>>, vector<16x96xf32>
    %c0_1 = arith.constant 0 : index
    %c0_2 = arith.constant 0 : index
    %1 = vector.load %arg2[%c0_1, %c0_2] : memref<1x96xf32, #tpu.memory_space<vmem>>, vector<1x96xf32>
    %c0_3 = arith.constant 0 : index
    %c0_4 = arith.constant 0 : index
    %2 = vector.load %arg3[%c0_3, %c0_4] : memref<16x1xf32, #tpu.memory_space<vmem>>, vector<16x1xf32>
    %3 = vector.broadcast %1 : vector<1x96xf32> to vector<16x96xf32>
    %4 = arith.mulf %0, %3 : vector<16x96xf32>
    %cst = arith.constant dense<0.000000e+00> : vector<16xf32>
    %5 = vector.multi_reduction <add>, %4, %cst [1] : vector<16x96xf32> to vector<16xf32>
    %6 = vector.shape_cast %5 : vector<16xf32> to vector<16x1xf32>
    %7 = arith.addf %6, %2 : vector<16x1xf32>
    %cst_5 = arith.constant 0.000000e+00 : f32
    %8 = vector.broadcast %cst_5 : f32 to vector<16x1xf32>
    %9 = arith.cmpf ogt, %7, %8 : vector<16x1xf32>
    %10 = arith.extui %9 : vector<16x1xi1> to vector<16x1xi32>
    %11 = arith.sitofp %10 : vector<16x1xi32> to vector<16x1xf32>
    %12 = vector.broadcast %11 : vector<16x1xf32> to vector<16x96xf32>
    %13 = arith.mulf %0, %12 : vector<16x96xf32>
    %c0_6 = arith.constant 0 : index
    %c0_7 = arith.constant 0 : index
    %14 = vector.load %arg4[%c0_6, %c0_7] : memref<16x96xf32, #tpu.memory_space<vmem>>, vector<16x96xf32>
    tpu.vector_store %arg4[%c0_6, %c0_7], %13 {strides = array<i32>} : memref<16x96xf32, #tpu.memory_space<vmem>>, vector<16x96xf32>,
    return
  }
  func.func @transform_0(%arg0: i32) -> (i32, i32) {
    %c0_i32 = arith.constant 0 : i32
    %c0_i32_0 = arith.constant 0 : i32
    return %arg0, %c0_i32 : i32, i32
  }
  func.func @transform_1(%arg0: i32) -> (i32, i32) {
    %c0_i32 = arith.constant 0 : i32
    %c0_i32_0 = arith.constant 0 : i32
    %c0_i32_1 = arith.constant 0 : i32
    return %c0_i32, %c0_i32_0 : i32, i32
  }
  func.func @transform_2(%arg0: i32) -> (i32, i32) {
    %c0_i32 = arith.constant 0 : i32
    %c0_i32_0 = arith.constant 0 : i32
    return %arg0, %c0_i32 : i32, i32
  }
  func.func @transform_3(%arg0: i32) -> (i32, i32) {
    %c0_i32 = arith.constant 0 : i32
    %c0_i32_0 = arith.constant 0 : i32
    return %arg0, %c0_i32 : i32, i32
  }
}

</mosaic_0001>

<llo_original>
// kernel: tpu_custom_call.1
$region0: #{tpu_custom_call.1}
  #allocation0 [shape = 'u32[]', space=smem, size = 0x4, offset = 0x4, fixed_abs, tag = 'smem constant byte address 0x4 - core index']
  #allocation1 [shape = 'u32[144,128]{1,0:T(1,128)}', space=vmem, size = 0x12000, scoped, tag = 'internal scratch']
  %s0 = inlined_call_operand.vmem [shape: f32[16,96], index: 0, kind: input, shape index: {}]
  %s1 = inlined_call_operand.vmem [shape: f32[1,96], index: 1, kind: input, shape index: {}]
  %s2 = inlined_call_operand.vmem [shape: f32[16,1], index: 2, kind: input, shape index: {}]
  %s3 = inlined_call_operand.hbm [shape: f32[16,96], index: 3, kind: output, shape index: {}]
  %s4 = sld [smem:[#allocation0]]
  $region22: #{tpu_custom_call.1} parent=0
    _
  %s6 = ssub.s32 1, %s4
  %s7 = scalar_select 0, %s6, %s4
  $region1: #{tpu_custom_call.1} parent=0
    #allocation2 [shape = 'u8[8192]{0}', space=vmem, size = 0x2000, scoped, tag = 'output window, operand 0, single buffered']
    #allocation3 [shape = 's32[1]{0}', space=sflag, size = 0x4, scoped, tag = 'scoped memory for tpu_custom_call.1']
    %8 = vsyncpa [#allocation3], 0
    // Predicated region
    $region2: #{tpu_custom_call.1} parent=1 // pred_check
      _
    $region3: #{tpu_custom_call.1} parent=1 // pred_check_branch
      %10 = sbr.rel (0) target = $region5
    $region4: #{tpu_custom_call.1} parent=1 // pred_region
      _
    $region5: #{tpu_custom_call.1} parent=1 // pred_fallthru
      _
    // Predicated region
    $region6: #{tpu_custom_call.1} parent=1 // pred_check
      _
    $region7: #{tpu_custom_call.1} parent=1 // pred_check_branch
      %12 = sbr.rel (0) target = $region9
    $region8: #{tpu_custom_call.1} parent=1 // pred_region
      _
    $region9: #{tpu_custom_call.1} parent=1 // pred_fallthru
      _
    // Predicated region
    $region10: #{tpu_custom_call.1} parent=1 // pred_check
      _
    $region11: #{tpu_custom_call.1} parent=1 // pred_check_branch
      %14 = sbr.rel (0) target = $region13
    $region12: #{tpu_custom_call.1} parent=1 // pred_region
      _
    $region13: #{tpu_custom_call.1} parent=1 // pred_fallthru
      _
    %v15 = vld [vmem:[%s0] sm:$0xff]
    %v16 = vld [vmem:[%s0 + $0x8] sm:$0xff]
    %v17 = vld [vmem:[%s1] sm:$0x1]
    %v18 = vld [vmem:[%s2] sm:$0xff]
    %v19 = vld [vmem:[%s2 + $0x8] sm:$0xff]
    %v21 = vlaneseq
    %v22 = vshrl.u32 %v21, 7
    %v23 = vsub.s32 0, %v22
    %v24 = vrot.slane %v17, %v23
    %v26 = vmul.f32 %v15, %v24
    %v27 = vmul.f32 %v16, %v24
    %vm28 = vcmask 785408
    %v29 = vsel %vm28, %v26, 0.0
    %30 = vadd.xlane.f32.xlu0 %v29
    %v31 = vpop.xlane.xlu0 %30
    %v32 = vsel %vm28, %v27, 0.0
    %33 = vadd.xlane.f32.xlu0 %v32
    %v34 = vpop.xlane.xlu0 %33
    %v35 = vadd.f32 %v31, %v18
    %v36 = vadd.f32 %v34, %v19
    %vm37 = vcmp.gt.f32.partialorder %v35, 0.0
    %vm38 = vcmp.gt.f32.partialorder %v36, 0.0
    %v39 = vsel %vm37, 1, 0
    %v40 = vsel %vm38, 1, 0
    %v41 = vcvt.s32.f32 %v39
    %v42 = vcvt.s32.f32 %v40
    %44 = vset.pattern.permute.xlu0 0
    %45 = vperm.xlu0 %44, %v41
    %v46 = vpop.permute.xlu0 %45
    %49 = vset.pattern.permute.xlu0 0
    %50 = vperm.xlu0 %49, %v42
    %v51 = vpop.permute.xlu0 %50
    %v53 = vmul.f32 %v15, %v46
    %v54 = vmul.f32 %v16, %v51
    %55 = vst.msk [vmem:[#allocation2] sm:$0xff] %vm28, %v53
    %56 = vst.msk [vmem:[#allocation2 + $0x8] sm:$0xff] %vm28, %v54
    // Predicated region
    $region14: #{tpu_custom_call.1} parent=1 // pred_check
      _
    $region15: #{tpu_custom_call.1} parent=1 // pred_check_branch
      %58 = sbr.rel (0) target = $region17
    $region16: #{tpu_custom_call.1} parent=1 // pred_region
      %s60 = ssub.s32 256, 256
      %61 = vsyncadd [#allocation3], %s60
      %s62 = sshll.u32 [#allocation2], 4
      %s63 = int_to_ptr.vmem [resolvable:$true] %s62
      %68 = dma.vmem_to_hbm [thread:$0]  %s63, 256, %s3, [#allocation3], 128, 128, 8
    $region17: #{tpu_custom_call.1} parent=1 // pred_fallthru
      _
    // Predicated region
    $region18: #{tpu_custom_call.1} parent=1 // pred_check
      _
    $region19: #{tpu_custom_call.1} parent=1 // pred_check_branch
      %70 = sbr.rel (0) target = $region21
    $region20: #{tpu_custom_call.1} parent=1 // pred_region
      %71 = dma.done [#allocation3], 256
    $region21: #{tpu_custom_call.1} parent=1 // pred_fallthru
      _
    %72 = vsyncpa [#allocation3], 1

</llo_original>
